<compile_context>
chip_gen: v7x
topology: tpu7x:2x2x1
jax: 0.10.0
libtpu: 0.0.40
codegen_flags: <defaults>
</compile_context>

<pallas_src>
import jax
import jax.numpy as jnp
from jax import lax
from jax.experimental import pallas as pl
from jax.experimental.pallas import tpu as pltpu

UPDATE_BIAS = -1.0
LN_EPS = 1e-5  # PyTorch nn.LayerNorm default


def gru_seq_kernel(x_ref, s0_ref, wx_ref, wh_ref, gamma_ref, beta_ref,
                   out_ref, state_scr):
    # x_ref:     (1, B_blk, action_dim)   inputs for this timestep / batch block
    # s0_ref:    (B_blk, obs_dim)         initial state for this batch block
    # wx_ref:    (action_dim, 3*obs_dim)  resident weight (inputs part)
    # wh_ref:    (obs_dim,    3*obs_dim)  resident weight (state part)
    # gamma_ref: (1, 3*obs_dim)           LayerNorm weight
    # beta_ref:  (1, 3*obs_dim)           LayerNorm bias (update_bias pre-folded)
    # out_ref:   (1, B_blk, obs_dim)      per-step output
    # state_scr: (B_blk, obs_dim) VMEM    carried hidden state
    t = pl.program_id(1)
    obs_dim = state_scr.shape[-1]

    @pl.when(t == 0)
    def _init():
        state_scr[...] = s0_ref[...]

    state = state_scr[...]
    x = x_ref[0]

    # Linear (bias=False because norm=True); split matmul replaces torch.cat.
    h = jnp.dot(x, wx_ref[...], preferred_element_type=jnp.float32)
    h = h + jnp.dot(state, wh_ref[...], preferred_element_type=jnp.float32)

    # LayerNorm over the last dim (biased variance, eps=1e-5, like PyTorch).
    mean = jnp.mean(h, axis=-1, keepdims=True)
    centered = h - mean
    var = jnp.mean(centered * centered, axis=-1, keepdims=True)
    h = centered * lax.rsqrt(var + LN_EPS)
    h = h * gamma_ref[...] + beta_ref[...]   # beta already contains +update_bias slice

    # Gates: reset / candidate / update.
    reset = jax.nn.sigmoid(h[:, 0:obs_dim])
    candidate = jnp.tanh(reset * h[:, obs_dim:2 * obs_dim])   # activation = tanh
    update = jax.nn.sigmoid(h[:, 2 * obs_dim:3 * obs_dim])

    new_state = state + update * (candidate - state)
    state_scr[...] = new_state
    out_ref[0] = new_state.astype(out_ref.dtype)


def gru_rollout(inputs_seq, state0, w, gamma, beta):
    """Apply the GRU module's forward over T steps in a single pallas_call.

    inputs_seq: (T, B, action_dim), state0: (B, obs_dim),
    w: (action_dim + obs_dim, 3*obs_dim), gamma/beta: (1, 3*obs_dim)
    returns: (T, B, obs_dim) -- the state after each step.
    """
    T, B, action_dim = inputs_seq.shape
    obs_dim = state0.shape[-1]
    hid3 = 3 * obs_dim

    # Split the weight once (replaces the per-step concat) and fold the update bias
    # into the LayerNorm shift so the kernel skips one broadcast-add per step.
    w_x = w[:action_dim]
    w_h = w[action_dim:]
    beta_folded = beta.at[:, 2 * obs_dim:].add(UPDATE_BIAS)

    # Batch tiling: "parallel" outer axis (v7x: 2 TensorCores split batch blocks);
    # time is the inner "arbitrary" axis because of the state carry.
    b_blk = B if B <= 128 else 128
    assert B % b_blk == 0 and b_blk % 8 == 0
    nb = B // b_blk

    grid = (nb, T)
    return pl.pallas_call(
        gru_seq_kernel,
        out_shape=jax.ShapeDtypeStruct((T, B, obs_dim), jnp.float32),
        grid=grid,
        in_specs=[
            pl.BlockSpec((1, b_blk, action_dim), lambda b, t: (t, b, 0)),
            pl.BlockSpec((b_blk, obs_dim), lambda b, t: (b, 0)),
            # Constant index maps -> weights / LN params DMA'd once, stay resident.
            pl.BlockSpec((action_dim, hid3), lambda b, t: (0, 0)),
            pl.BlockSpec((obs_dim, hid3), lambda b, t: (0, 0)),
            pl.BlockSpec((1, hid3), lambda b, t: (0, 0)),
            pl.BlockSpec((1, hid3), lambda b, t: (0, 0)),
        ],
        out_specs=pl.BlockSpec((1, b_blk, obs_dim), lambda b, t: (t, b, 0)),
        scratch_shapes=[pltpu.VMEM((b_blk, obs_dim), jnp.float32)],
        compiler_params=pltpu.CompilerParams(
            dimension_semantics=("parallel", "arbitrary")),
    )(inputs_seq, state0, w_x, w_h, gamma, beta_folded)


def gru_forward(inputs, state, w, gamma, beta):
    """Single-step API matching GRU.forward(inputs, state)."""
    out = gru_rollout(inputs[None], state, w, gamma, beta)
    return out[0]


def reference_rollout(inputs_seq, state0, w, gamma, beta):
    """Plain-JAX transcription of the PyTorch module, scanned over time."""
    obs_dim = state0.shape[-1]

    def step(state, x_t):
        x = jnp.concatenate([x_t, state], axis=-1)
        h = x @ w
        mean = jnp.mean(h, axis=-1, keepdims=True)
        var = jnp.mean((h - mean) ** 2, axis=-1, keepdims=True)
        h = (h - mean) * lax.rsqrt(var + LN_EPS) * gamma + beta
        reset, candidate, update = jnp.split(h, [obs_dim, 2 * obs_dim], axis=-1)
        reset = jax.nn.sigmoid(reset)
        candidate = jnp.tanh(reset * candidate)
        update = jax.nn.sigmoid(update + UPDATE_BIAS)
        new = update * candidate + (1.0 - update) * state
        return new, new

    _, outs = lax.scan(step, state0, inputs_seq)
    return outs


if __name__ == "__main__":
    # Small shapes consistent with the module's forward, rolled over a short horizon.
    T = 16         # rollout length (fused into one kernel)
    B = 8          # batch
    obs_dim = 32   # hidden / observation dim
    action_dim = 16

    key = jax.random.PRNGKey(0)
    k_in, k_st, k_w, k_g, k_b = jax.random.split(key, 5)

    inputs_seq = jax.random.normal(k_in, (T, B, action_dim), dtype=jnp.float32)
    state0 = jax.random.normal(k_st, (B, obs_dim), dtype=jnp.float32)

    in_dim = obs_dim + action_dim
    # nn.Linear(in_dim, 3*obs_dim, bias=False): uniform(-1/sqrt(in_dim), 1/sqrt(in_dim))
    bound = 1.0 / jnp.sqrt(jnp.float32(in_dim))
    w = jax.random.uniform(k_w, (in_dim, 3 * obs_dim), jnp.float32, -bound, bound)
    # LayerNorm params (PyTorch init: weight=1, bias=0); perturbed deterministically.
    gamma = jnp.ones((1, 3 * obs_dim), jnp.float32) + 0.01 * jax.random.normal(
        k_g, (1, 3 * obs_dim), jnp.float32)
    beta = 0.01 * jax.random.normal(k_b, (1, 3 * obs_dim), jnp.float32)

    out = gru_rollout(inputs_seq, state0, w, gamma, beta)
    out = jax.block_until_ready(out)

    ref = reference_rollout(inputs_seq, state0, w, gamma, beta)
    assert out.shape == (T, B, obs_dim)
    max_err = float(jnp.max(jnp.abs(out - ref)))
    assert max_err < 1e-4, f"mismatch vs reference, max abs err {max_err}"

    # Also sanity-check the single-step API against one module forward.
    one = gru_forward(inputs_seq[0], state0, w, gamma, beta)
    one = jax.block_until_ready(one)
    assert float(jnp.max(jnp.abs(one - ref[0]))) < 1e-4

    print("KERNEL_OK")
</pallas_src>

<mosaic_0001>
module attributes {stable_mosaic.version = 11 : i64} {
  func.func @gru_seq_kernel(%arg0: i32, %arg1: i32, %arg2: memref<1x8x16xf32, #tpu.memory_space<vmem>>, %arg3: memref<8x32xf32, #tpu.memory_space<vmem>>, %arg4: memref<16x96xf32, #tpu.memory_space<vmem>>, %arg5: memref<32x96xf32, #tpu.memory_space<vmem>>, %arg6: memref<1x96xf32, #tpu.memory_space<vmem>>, %arg7: memref<1x96xf32, #tpu.memory_space<vmem>>, %arg8: memref<1x8x32xf32, #tpu.memory_space<vmem>>, %arg9: memref<8x32xf32, #tpu.memory_space<vmem>>) attributes {dimension_semantics = [#tpu.dimension_semantics<parallel>, #tpu.dimension_semantics<arbitrary>], iteration_bounds = array<i64: 1, 16>, scalar_prefetch = 0 : i64, scratch_operands = 1 : i64, tpu.core_type = #tpu.core_type<tc>, window_params = [{transform_indices = @transform_0, window_bounds = array<i64: 1, 8, 16>}, {transform_indices = @transform_1, window_bounds = array<i64: 8, 32>}, {pipeline_mode = #tpu.pipeline_mode<synchronous>, transform_indices = @transform_2, window_bounds = array<i64: 16, 96>}, {pipeline_mode = #tpu.pipeline_mode<synchronous>, transform_indices = @transform_3, window_bounds = array<i64: 32, 96>}, {pipeline_mode = #tpu.pipeline_mode<synchronous>, transform_indices = @transform_4, window_bounds = array<i64: 1, 96>}, {pipeline_mode = #tpu.pipeline_mode<synchronous>, transform_indices = @transform_5, window_bounds = array<i64: 1, 96>}, {transform_indices = @transform_6, window_bounds = array<i64: 1, 8, 32>}]} {
    %c0_i32 = arith.constant 0 : i32
    %0 = arith.cmpi eq, %arg1, %c0_i32 : i32
    %1 = arith.extui %0 : i1 to i32
    %c0_i32_0 = arith.constant 0 : i32
    %2 = arith.cmpi ne, %1, %c0_i32_0 : i32
    scf.if %2 {
      %c0_26 = arith.constant 0 : index
      %c0_27 = arith.constant 0 : index
      %55 = vector.load %arg3[%c0_26, %c0_27] : memref<8x32xf32, #tpu.memory_space<vmem>>, vector<8x32xf32>
      %c0_28 = arith.constant 0 : index
      %c0_29 = arith.constant 0 : index
      %56 = vector.load %arg9[%c0_28, %c0_29] : memref<8x32xf32, #tpu.memory_space<vmem>>, vector<8x32xf32>
      tpu.vector_store %arg9[%c0_28, %c0_29], %55 {strides = array<i32>} : memref<8x32xf32, #tpu.memory_space<vmem>>, vector<8x32xf32>,
    } else {
    }
    %c0 = arith.constant 0 : index
    %c0_1 = arith.constant 0 : index
    %3 = vector.load %arg9[%c0, %c0_1] : memref<8x32xf32, #tpu.memory_space<vmem>>, vector<8x32xf32>
    %c0_2 = arith.constant 0 : index
    %c0_3 = arith.constant 0 : index
    %c0_4 = arith.constant 0 : index
    %4 = vector.load %arg2[%c0_2, %c0_3, %c0_4] : memref<1x8x16xf32, #tpu.memory_space<vmem>>, vector<1x8x16xf32>
    %5 = vector.shape_cast %4 : vector<1x8x16xf32> to vector<8x16xf32>
    %c0_5 = arith.constant 0 : index
    %c0_6 = arith.constant 0 : index
    %6 = vector.load %arg4[%c0_5, %c0_6] : memref<16x96xf32, #tpu.memory_space<vmem>>, vector<16x96xf32>
    %cst = arith.constant dense<0.000000e+00> : vector<8x96xf32>
    %7 = tpu.matmul %5, %6, %cst {dimension_numbers = #tpu.dot_dimension_numbers<[1], [0], [0], [1], [0, 0, 1, 1], [], []>} : vector<8x16xf32>, vector<16x96xf32>, vector<8x96xf32> -> vector<8x96xf32>
    %c0_7 = arith.constant 0 : index
    %c0_8 = arith.constant 0 : index
    %8 = vector.load %arg5[%c0_7, %c0_8] : memref<32x96xf32, #tpu.memory_space<vmem>>, vector<32x96xf32>
    %cst_9 = arith.constant dense<0.000000e+00> : vector<8x96xf32>
    %9 = tpu.matmul %3, %8, %cst_9 {dimension_numbers = #tpu.dot_dimension_numbers<[1], [0], [0], [1], [0, 0, 1, 1], [], []>} : vector<8x32xf32>, vector<32x96xf32>, vector<8x96xf32> -> vector<8x96xf32>
    %10 = arith.addf %7, %9 : vector<8x96xf32>
    %cst_10 = arith.constant dense<0.000000e+00> : vector<8xf32>
    %11 = vector.multi_reduction <add>, %10, %cst_10 [1] : vector<8x96xf32> to vector<8xf32>
    %12 = vector.shape_cast %11 : vector<8xf32> to vector<8x1xf32>
    %cst_11 = arith.constant 9.600000e+01 : f32
    %13 = vector.broadcast %cst_11 : f32 to vector<8x1xf32>
    %14 = arith.divf %12, %13 : vector<8x1xf32>
    %15 = vector.broadcast %14 : vector<8x1xf32> to vector<8x96xf32>
    %16 = arith.subf %10, %15 : vector<8x96xf32>
    %17 = arith.mulf %16, %16 : vector<8x96xf32>
    %cst_12 = arith.constant dense<0.000000e+00> : vector<8xf32>
    %18 = vector.multi_reduction <add>, %17, %cst_12 [1] : vector<8x96xf32> to vector<8xf32>
    %19 = vector.shape_cast %18 : vector<8xf32> to vector<8x1xf32>
    %cst_13 = arith.constant 9.600000e+01 : f32
    %20 = vector.broadcast %cst_13 : f32 to vector<8x1xf32>
    %21 = arith.divf %19, %20 : vector<8x1xf32>
    %cst_14 = arith.constant 9.99999974E-6 : f32
    %22 = vector.broadcast %cst_14 : f32 to vector<8x1xf32>
    %23 = arith.addf %21, %22 : vector<8x1xf32>
    %24 = math.rsqrt %23 : vector<8x1xf32>
    %25 = vector.broadcast %24 : vector<8x1xf32> to vector<8x96xf32>
    %26 = arith.mulf %16, %25 : vector<8x96xf32>
    %c0_15 = arith.constant 0 : index
    %c0_16 = arith.constant 0 : index
    %27 = vector.load %arg6[%c0_15, %c0_16] : memref<1x96xf32, #tpu.memory_space<vmem>>, vector<1x96xf32>
    %28 = vector.broadcast %27 : vector<1x96xf32> to vector<8x96xf32>
    %29 = arith.mulf %26, %28 : vector<8x96xf32>
    %c0_17 = arith.constant 0 : index
    %c0_18 = arith.constant 0 : index
    %30 = vector.load %arg7[%c0_17, %c0_18] : memref<1x96xf32, #tpu.memory_space<vmem>>, vector<1x96xf32>
    %31 = vector.broadcast %30 : vector<1x96xf32> to vector<8x96xf32>
    %32 = arith.addf %29, %31 : vector<8x96xf32>
    %33 = vector.extract_strided_slice %32 {offsets = [0, 0], sizes = [8, 32], strides = [1, 1]} : vector<8x96xf32> to vector<8x32xf32>
    %34 = arith.negf %33 : vector<8x32xf32>
    %35 = math.exp %34 : vector<8x32xf32>
    %cst_19 = arith.constant 1.000000e+00 : f32
    %36 = vector.broadcast %cst_19 : f32 to vector<8x32xf32>
    %37 = arith.addf %36, %35 : vector<8x32xf32>
    %38 = arith.divf %36, %37 : vector<8x32xf32>
    %39 = vector.extract_strided_slice %32 {offsets = [0, 32], sizes = [8, 32], strides = [1, 1]} : vector<8x96xf32> to vector<8x32xf32>
    %40 = arith.mulf %38, %39 : vector<8x32xf32>
    %41 = math.tanh %40 : vector<8x32xf32>
    %42 = vector.extract_strided_slice %32 {offsets = [0, 64], sizes = [8, 32], strides = [1, 1]} : vector<8x96xf32> to vector<8x32xf32>
    %43 = arith.negf %42 : vector<8x32xf32>
    %44 = math.exp %43 : vector<8x32xf32>
    %cst_20 = arith.constant 1.000000e+00 : f32
    %45 = vector.broadcast %cst_20 : f32 to vector<8x32xf32>
    %46 = arith.addf %45, %44 : vector<8x32xf32>
    %47 = arith.divf %45, %46 : vector<8x32xf32>
    %48 = arith.subf %41, %3 : vector<8x32xf32>
    %49 = arith.mulf %47, %48 : vector<8x32xf32>
    %50 = arith.addf %3, %49 : vector<8x32xf32>
    %c0_21 = arith.constant 0 : index
    %c0_22 = arith.constant 0 : index
    %51 = vector.load %arg9[%c0_21, %c0_22] : memref<8x32xf32, #tpu.memory_space<vmem>>, vector<8x32xf32>
    tpu.vector_store %arg9[%c0_21, %c0_22], %50 {strides = array<i32>} : memref<8x32xf32, #tpu.memory_space<vmem>>, vector<8x32xf32>,
    %c0_23 = arith.constant 0 : index
    %c0_24 = arith.constant 0 : index
    %c0_25 = arith.constant 0 : index
    %52 = vector.load %arg8[%c0_23, %c0_24, %c0_25] : memref<1x8x32xf32, #tpu.memory_space<vmem>>, vector<1x8x32xf32>
    %53 = vector.shape_cast %52 : vector<1x8x32xf32> to vector<8x32xf32>
    %54 = vector.shape_cast %50 : vector<8x32xf32> to vector<1x8x32xf32>
    tpu.vector_store %arg8[%c0_23, %c0_24, %c0_25], %54 {strides = array<i32>} : memref<1x8x32xf32, #tpu.memory_space<vmem>>, vector<1x8x32xf32>,
    return
  }
  func.func @transform_0(%arg0: i32, %arg1: i32) -> (i32, i32, i32) {
    %c0_i32 = arith.constant 0 : i32
    %c0_i32_0 = arith.constant 0 : i32
    return %arg1, %arg0, %c0_i32 : i32, i32, i32
  }
  func.func @transform_1(%arg0: i32, %arg1: i32) -> (i32, i32) {
    %c0_i32 = arith.constant 0 : i32
    %c0_i32_0 = arith.constant 0 : i32
    return %arg0, %c0_i32 : i32, i32
  }
  func.func @transform_2(%arg0: i32, %arg1: i32) -> (i32, i32) {
    %c0_i32 = arith.constant 0 : i32
    %c0_i32_0 = arith.constant 0 : i32
    %c0_i32_1 = arith.constant 0 : i32
    return %c0_i32, %c0_i32_0 : i32, i32
  }
  func.func @transform_3(%arg0: i32, %arg1: i32) -> (i32, i32) {
    %c0_i32 = arith.constant 0 : i32
    %c0_i32_0 = arith.constant 0 : i32
    %c0_i32_1 = arith.constant 0 : i32
    return %c0_i32, %c0_i32_0 : i32, i32
  }
  func.func @transform_4(%arg0: i32, %arg1: i32) -> (i32, i32) {
    %c0_i32 = arith.constant 0 : i32
    %c0_i32_0 = arith.constant 0 : i32
    %c0_i32_1 = arith.constant 0 : i32
    return %c0_i32, %c0_i32_0 : i32, i32
  }
  func.func @transform_5(%arg0: i32, %arg1: i32) -> (i32, i32) {
    %c0_i32 = arith.constant 0 : i32
    %c0_i32_0 = arith.constant 0 : i32
    %c0_i32_1 = arith.constant 0 : i32
    return %c0_i32, %c0_i32_0 : i32, i32
  }
  func.func @transform_6(%arg0: i32, %arg1: i32) -> (i32, i32, i32) {
    %c0_i32 = arith.constant 0 : i32
    %c0_i32_0 = arith.constant 0 : i32
    return %arg1, %arg0, %c0_i32 : i32, i32, i32
  }
}

</mosaic_0001>

<llo_original>
// kernel: tpu_custom_call.1
$region0: #{tpu_custom_call.1}
  #allocation0 [shape = 'u32[]', space=smem, size = 0x4, offset = 0x4, fixed_abs, tag = 'smem constant byte address 0x4 - core index']
  #allocation1 [shape = 'u32[144,128]{1,0:T(1,128)}', space=vmem, size = 0x12000, scoped, tag = 'internal scratch']
  #allocation2 [shape = 'f32[8,32]{1,0:T(8,128)}', space=vmem, size = 0x1000, scoped, tag = 'scratch operand']
  %s0 = inlined_call_operand.hbm [shape: f32[16,8,16], index: 0, kind: input, shape index: {}]
  %s1 = inlined_call_operand.hbm [shape: f32[8,32], index: 1, kind: input, shape index: {}]
  %s2 = inlined_call_operand.hbm [shape: f32[16,96], index: 2, kind: input, shape index: {}]
  %s3 = inlined_call_operand.hbm [shape: f32[32,96], index: 3, kind: input, shape index: {}]
  %s4 = inlined_call_operand.vmem [shape: f32[1,96], index: 4, kind: input, shape index: {}]
  %s5 = inlined_call_operand.vmem [shape: f32[1,96], index: 5, kind: input, shape index: {}]
  %s6 = inlined_call_operand.hbm [shape: f32[16,8,32], index: 6, kind: output, shape index: {}]
  %s7 = sld [smem:[#allocation0]]
  $region77: #{tpu_custom_call.1} parent=0
    _
  %s9 = ssub.s32 1, %s7
  %s10 = scalar_select 0, %s9, %s7
  $region1: #{tpu_custom_call.1} parent=0
    #allocation3 [shape = 'u8[8192]{0}', space=vmem, size = 0x2000, scoped, tag = 'input window, operand 0']
    #allocation4 [shape = 's32[2]{0}', space=sflag, size = 0x8, scoped, tag = 'scoped memory for tpu_custom_call.1']
    #allocation5 [shape = 's32[2]{0}', space=sflag, size = 0x8, scoped, tag = 'scoped memory for tpu_custom_call.1']
    #allocation6 [shape = 'u8[4096]{0}', space=vmem, size = 0x1000, scoped, tag = 'input window, operand 1, single buffered']
    #allocation7 [shape = 's32[1]{0}', space=sflag, size = 0x4, scoped, tag = 'scoped memory for tpu_custom_call.1']
    #allocation8 [shape = 'u8[8192]{0}', space=vmem, size = 0x2000, scoped, tag = 'input window, operand 2, single buffered']
    #allocation9 [shape = 'u8[16384]{0}', space=vmem, size = 0x4000, scoped, tag = 'input window, operand 3, single buffered']
    #allocation10 [shape = 's32[1]{0}', space=sflag, size = 0x4, scoped, tag = 'scoped memory for tpu_custom_call.1']
    #allocation11 [shape = 'u8[8192]{0}', space=vmem, size = 0x2000, scoped, tag = 'output window, operand 0']
    %11 = vsyncpa [#allocation4], 0
    %s12 = scalar_lea.sflag [#allocation4], 1
    %13 = vsyncpa %s12, 0
    %14 = vsyncpa [#allocation7], 0
    %15 = vsyncpa [#allocation10], 0
    %16 = vsyncpa [#allocation5], 0
    %s17 = scalar_lea.sflag [#allocation5], 1
    %18 = vsyncpa %s17, 0
    loop: start=0, step=1, limit=18
    $region2: #{tpu_custom_call.1} parent=1 // loop_pre_header
      _
    $region3: #{tpu_custom_call.1} parent=1 // loop_header
      %s20 = sphi 0, %s24
      %p21 = scmp.ge.s32.totalorder %s20, 18
      %s27 = sphi 0, %s39
      %s28 = sphi 0, %s35
      %s29 = sphi 0, %s27
      %s30 = sphi 0, %s28
      %s31 = sphi 0, %s29
      %s32 = sphi 0, %s30
      %s44 = sphi 0, %s46
      %s47 = sphi 0, %s44
      %s48 = sphi 0, %s47
      %s64 = sphi 0, %s48
      %s70 = sphi 0, %s72
      %s73 = sphi 0, %s70
      %s74 = sphi 0, %s73
      %s90 = sphi 0, %s74
      %s94 = sphi 0, %s94
      %s96 = sphi 0, %s94
      %s97 = sphi 0, %s96
      %s111 = sphi 0, %s97
      %s115 = sphi 0, %s115
      %s117 = sphi 0, %s115
      %s118 = sphi 0, %s117
      %s132 = sphi 0, %s118
      %s136 = sphi 0, %s136
      %s138 = sphi 0, %s136
      %s139 = sphi 0, %s138
      %s153 = sphi 0, %s139
      %s157 = sphi 0, %s157
      %s159 = sphi 0, %s157
      %s160 = sphi 0, %s159
      %s174 = sphi 0, %s160
      %s182 = sphi 0, %s184
      %s185 = sphi 0, %s182
      %s186 = sphi 0, %s185
      %s202 = sphi 0, %s186
    $region4: #{tpu_custom_call.1} parent=1 // loop_header_branch
      %23 = sbr.rel (%p21) target = $region8
    $region5: #{tpu_custom_call.1} parent=1 // loop_body
      %s25 = ssub.s32 %s20, 1
      %s26 = ssub.s32 %s20, 2
      %s33 = sadd.s32 1, %s28
      %p34 = scmp.ge.s32.totalorder %s33, 16
      %s35 = scalar_select %p34, 0, %s33
      %s36 = sadd.s32 1, %s27
      %s37 = scalar_select %p34, %s36, %s27
      %p38 = scmp.ge.s32.totalorder %s37, 1
      %s39 = scalar_select %p38, 0, %s37
      %s40 = ssub.s32 %s28, %s35
      %s41 = ssub.s32 %s27, %s39
      %s42 = sor.u32 %s40, %s41
      %p43 = scmp.eq.s32.totalorder %s42, 0
      %s45 = sadd.s32 %s44, 1
      %s46 = scalar_select %p43, %s44, %s45
      %p49 = pneg %p43
      %p50 = scmp.eq.s32.totalorder %s20, 15
      %p51 = por %p49, %p50
      %p52 = scmp.ne.s32.totalorder %s44, %s47
      %p53 = scmp.eq.s32.totalorder %s20, 0
      %p54 = por %p52, %p53
      %p55 = scmp.ne.s32.totalorder %s44, %s47
      %p56 = scmp.eq.s32.totalorder %s25, 15
      %p57 = por %p55, %p56
      %p58 = scmp.ne.s32.totalorder %s47, %s48
      %p59 = scmp.eq.s32.totalorder %s25, 0
      %p60 = por %p58, %p59
      %p61 = scmp.ne.s32.totalorder %s47, %s48
      %p62 = scmp.eq.s32.totalorder %s26, 15
      %p63 = por %p61, %p62
      %p65 = scmp.ne.s32.totalorder %s48, %s64
      %p66 = scmp.eq.s32.totalorder %s26, 0
      %p67 = por %p65, %p66
      %s68 = ssub.s32 %s27, %s39
      %p69 = scmp.eq.s32.totalorder %s68, 0
      %s71 = sadd.s32 %s70, 1
      %s72 = scalar_select %p69, %s70, %s71
      %p75 = pneg %p69
      %p76 = scmp.eq.s32.totalorder %s20, 15
      %p77 = por %p75, %p76
      %p78 = scmp.ne.s32.totalorder %s70, %s73
      %p79 = scmp.eq.s32.totalorder %s20, 0
      %p80 = por %p78, %p79
      %p81 = scmp.ne.s32.totalorder %s70, %s73
      %p82 = scmp.eq.s32.totalorder %s25, 15
      %p83 = por %p81, %p82
      %p84 = scmp.ne.s32.totalorder %s73, %s74
      %p85 = scmp.eq.s32.totalorder %s25, 0
      %p86 = por %p84, %p85
      %p87 = scmp.ne.s32.totalorder %s73, %s74
      %p88 = scmp.eq.s32.totalorder %s26, 15
      %p89 = por %p87, %p88
      %p91 = scmp.ne.s32.totalorder %s74, %s90
      %p92 = scmp.eq.s32.totalorder %s26, 0
      %p93 = por %p91, %p92
      %s95 = sadd.s32 %s94, 1
      %p98 = scmp.eq.s32.totalorder %s20, 15
      %p99 = scmp.ne.s32.totalorder %s94, %s96
      %p100 = scmp.eq.s32.totalorder %s20, 0
      %p101 = por %p99, %p100
      %p102 = scmp.ne.s32.totalorder %s94, %s96
      %p103 = scmp.eq.s32.totalorder %s25, 15
      %p104 = por %p102, %p103
      %p105 = scmp.ne.s32.totalorder %s96, %s97
      %p106 = scmp.eq.s32.totalorder %s25, 0
      %p107 = por %p105, %p106
      %p108 = scmp.ne.s32.totalorder %s96, %s97
      %p109 = scmp.eq.s32.totalorder %s26, 15
      %p110 = por %p108, %p109
      %p112 = scmp.ne.s32.totalorder %s97, %s111
      %p113 = scmp.eq.s32.totalorder %s26, 0
      %p114 = por %p112, %p113
      %s116 = sadd.s32 %s115, 1
      %p119 = scmp.eq.s32.totalorder %s20, 15
      %p120 = scmp.ne.s32.totalorder %s115, %s117
      %p121 = scmp.eq.s32.totalorder %s20, 0
      %p122 = por %p120, %p121
      %p123 = scmp.ne.s32.totalorder %s115, %s117
      %p124 = scmp.eq.s32.totalorder %s25, 15
      %p125 = por %p123, %p124
      %p126 = scmp.ne.s32.totalorder %s117, %s118
      %p127 = scmp.eq.s32.totalorder %s25, 0
      %p128 = por %p126, %p127
      %p129 = scmp.ne.s32.totalorder %s117, %s118
      %p130 = scmp.eq.s32.totalorder %s26, 15
      %p131 = por %p129, %p130
      %p133 = scmp.ne.s32.totalorder %s118, %s132
      %p134 = scmp.eq.s32.totalorder %s26, 0
      %p135 = por %p133, %p134
      %s137 = sadd.s32 %s136, 1
      %p140 = scmp.eq.s32.totalorder %s20, 15
      %p141 = scmp.ne.s32.totalorder %s136, %s138
      %p142 = scmp.eq.s32.totalorder %s20, 0
      %p143 = por %p141, %p142
      %p144 = scmp.ne.s32.totalorder %s136, %s138
      %p145 = scmp.eq.s32.totalorder %s25, 15
      %p146 = por %p144, %p145
      %p147 = scmp.ne.s32.totalorder %s138, %s139
      %p148 = scmp.eq.s32.totalorder %s25, 0
      %p149 = por %p147, %p148
      %p150 = scmp.ne.s32.totalorder %s138, %s139
      %p151 = scmp.eq.s32.totalorder %s26, 15
      %p152 = por %p150, %p151
      %p154 = scmp.ne.s32.totalorder %s139, %s153
      %p155 = scmp.eq.s32.totalorder %s26, 0
      %p156 = por %p154, %p155
      %s158 = sadd.s32 %s157, 1
      %p161 = scmp.eq.s32.totalorder %s20, 15
      %p162 = scmp.ne.s32.totalorder %s157, %s159
      %p163 = scmp.eq.s32.totalorder %s20, 0
      %p164 = por %p162, %p163
      %p165 = scmp.ne.s32.totalorder %s157, %s159
      %p166 = scmp.eq.s32.totalorder %s25, 15
      %p167 = por %p165, %p166
      %p168 = scmp.ne.s32.totalorder %s159, %s160
      %p169 = scmp.eq.s32.totalorder %s25, 0
      %p170 = por %p168, %p169
      %p171 = scmp.ne.s32.totalorder %s159, %s160
      %p172 = scmp.eq.s32.totalorder %s26, 15
      %p173 = por %p171, %p172
      %p175 = scmp.ne.s32.totalorder %s160, %s174
      %p176 = scmp.eq.s32.totalorder %s26, 0
      %p177 = por %p175, %p176
      %s178 = ssub.s32 %s28, %s35
      %s179 = ssub.s32 %s27, %s39
      %s180 = sor.u32 %s178, %s179
      %p181 = scmp.eq.s32.totalorder %s180, 0
      %s183 = sadd.s32 %s182, 1
      %s184 = scalar_select %p181, %s182, %s183
      %p187 = pneg %p181
      %p188 = scmp.eq.s32.totalorder %s20, 15
      %p189 = por %p187, %p188
      %p190 = scmp.ne.s32.totalorder %s182, %s185
      %p191 = scmp.eq.s32.totalorder %s20, 0
      %p192 = por %p190, %p191
      %p193 = scmp.ne.s32.totalorder %s182, %s185
      %p194 = scmp.eq.s32.totalorder %s25, 15
      %p195 = por %p193, %p194
      %p196 = scmp.ne.s32.totalorder %s185, %s186
      %p197 = scmp.eq.s32.totalorder %s25, 0
      %p198 = por %p196, %p197
      %p199 = scmp.ne.s32.totalorder %s185, %s186
      %p200 = scmp.eq.s32.totalorder %s26, 15
      %p201 = por %p199, %p200
      %p203 = scmp.ne.s32.totalorder %s186, %s202
      %p204 = scmp.eq.s32.totalorder %s26, 0
      %p205 = por %p203, %p204
      %p206 = scmp.le.s32.totalorder 1, %s20
      %p207 = scmp.lt.s32.totalorder %s20, 17
      %p208 = pnand %p206, %p207
      %p209 = pneg %p208
      // Predicated region
      $region9: #{tpu_custom_call.1} parent=5 // pred_check
        _
      $region10: #{tpu_custom_call.1} parent=5 // pred_check_branch
        %211 = sbr.rel (%p208) target = $region12
      $region11: #{tpu_custom_call.1} parent=5 // pred_region
        %s212 = ssub.s32 %s20, 1
        // Predicated region
        $region13: #{tpu_custom_call.1} parent=11 // pred_check
          %p213 = pneg %p86
        $region14: #{tpu_custom_call.1} parent=11 // pred_check_branch
          %215 = sbr.rel (%p213) target = $region16
        $region15: #{tpu_custom_call.1} parent=11 // pred_region
          %s217 = ssub.s32 128, 128
          %218 = vsyncadd [#allocation7], %s217
          %s219 = smul.addr %s29, 128
          %s220 = scalar_lea.hbm %s1, %s219
          %s222 = sshll.u32 [#allocation6], 4
          %s223 = int_to_ptr.vmem [resolvable:$true] %s222
          %225 = dma.hbm_to_vmem [thread:$0]  %s220, 128, %s223, [#allocation7]
        $region16: #{tpu_custom_call.1} parent=11 // pred_fallthru
          _
        // Predicated region
        $region17: #{tpu_custom_call.1} parent=11 // pred_check
          %p226 = pneg %p107
        $region18: #{tpu_custom_call.1} parent=11 // pred_check_branch
          %228 = sbr.rel (%p226) target = $region20
        $region19: #{tpu_custom_call.1} parent=11 // pred_region
          %s230 = ssub.s32 256, 256
          %231 = vsyncadd [#allocation7], %s230
          %s232 = sshll.u32 [#allocation8], 4
          %s233 = int_to_ptr.vmem [resolvable:$true] %s232
          %238 = dma.hbm_to_vmem [thread:$0]  %s2, 256, %s233, [#allocation7], 128, 128, 8
        $region20: #{tpu_custom_call.1} parent=11 // pred_fallthru
          _
        // Predicated region
        $region21: #{tpu_custom_call.1} parent=11 // pred_check
          %p239 = pneg %p128
        $region22: #{tpu_custom_call.1} parent=11 // pred_check_branch
          %241 = sbr.rel (%p239) target = $region24
        $region23: #{tpu_custom_call.1} parent=11 // pred_region
          %s243 = ssub.s32 512, 512
          %244 = vsyncadd [#allocation10], %s243
          %s245 = sshll.u32 [#allocation9], 4
          %s246 = int_to_ptr.vmem [resolvable:$true] %s245
          %251 = dma.hbm_to_vmem [thread:$0]  %s3, 512, %s246, [#allocation10], 128, 128, 8
        $region24: #{tpu_custom_call.1} parent=11 // pred_fallthru
          _
        // Predicated region
        $region25: #{tpu_custom_call.1} parent=11 // pred_check
          %p252 = pneg %p149
        $region26: #{tpu_custom_call.1} parent=11 // pred_check_branch
          %254 = sbr.rel (%p252) target = $region28
        $region27: #{tpu_custom_call.1} parent=11 // pred_region
          _
        $region28: #{tpu_custom_call.1} parent=11 // pred_fallthru
          _
        // Predicated region
        $region29: #{tpu_custom_call.1} parent=11 // pred_check
          %p255 = pneg %p170
        $region30: #{tpu_custom_call.1} parent=11 // pred_check_branch
          %257 = sbr.rel (%p255) target = $region32
        $region31: #{tpu_custom_call.1} parent=11 // pred_region
          _
        $region32: #{tpu_custom_call.1} parent=11 // pred_fallthru
          _
      $region12: #{tpu_custom_call.1} parent=5 // pred_fallthru
        _
      %p258 = scmp.lt.s32.totalorder %s20, 16
      // Predicated region
      $region33: #{tpu_custom_call.1} parent=5 // pred_check
        %p259 = pneg %p258
      $region34: #{tpu_custom_call.1} parent=5 // pred_check_branch
        %261 = sbr.rel (%p259) target = $region36
      $region35: #{tpu_custom_call.1} parent=5 // pred_region
        // Predicated region
        $region37: #{tpu_custom_call.1} parent=35 // pred_check
          %p262 = pneg %p54
        $region38: #{tpu_custom_call.1} parent=35 // pred_check_branch
          %264 = sbr.rel (%p262) target = $region40
        $region39: #{tpu_custom_call.1} parent=35 // pred_region
          %s265 = sand.u32 %s44, 1
          %s266 = scalar_lea.sflag [#allocation4], %s265
          %s267 = sand.u32 %s44, 1
          %s268 = smul.addr %s267, 8
          %s269 = scalar_lea.vmem [#allocation3], %s268
          %s271 = ssub.s32 128, 128
          %272 = vsyncadd %s266, %s271
          %s273 = sadd.s32 %s27, %s28
          %s274 = smul.addr %s273, 128
          %s275 = scalar_lea.hbm %s0, %s274
          %s277 = sshll.u32 %s269, 4
          %s278 = int_to_ptr.vmem [resolvable:$true] %s277
          %280 = dma.hbm_to_vmem [thread:$0]  %s275, 128, %s278, %s266
        $region40: #{tpu_custom_call.1} parent=35 // pred_fallthru
          _
      $region36: #{tpu_custom_call.1} parent=5 // pred_fallthru
        _
      %p281 = scmp.le.s32.totalorder 1, %s20
      %p282 = scmp.lt.s32.totalorder %s20, 17
      %p283 = pnand %p281, %p282
      %p284 = pneg %p283
      // Predicated region
      $region41: #{tpu_custom_call.1} parent=5 // pred_check
        _
      $region42: #{tpu_custom_call.1} parent=5 // pred_check_branch
        %286 = sbr.rel (%p283) target = $region44
      $region43: #{tpu_custom_call.1} parent=5 // pred_region
        %s287 = ssub.s32 %s20, 1
        %s288 = sand.u32 %s47, 1
        %s289 = scalar_lea.sflag [#allocation4], %s288
        %s290 = sand.u32 %s47, 1
        %s291 = smul.addr %s290, 8
        %s292 = scalar_lea.vmem [#allocation3], %s291
        // Predicated region
        $region45: #{tpu_custom_call.1} parent=43 // pred_check
          %p293 = pneg %p60
        $region46: #{tpu_custom_call.1} parent=43 // pred_check_branch
          %295 = sbr.rel (%p293) target = $region48
        $region47: #{tpu_custom_call.1} parent=43 // pred_region
          %296 = dma.done %s289, 128
        $region48: #{tpu_custom_call.1} parent=43 // pred_fallthru
          _
        // Predicated region
        $region49: #{tpu_custom_call.1} parent=43 // pred_check
          %p297 = pneg %p86
        $region50: #{tpu_custom_call.1} parent=43 // pred_check_branch
          %299 = sbr.rel (%p297) target = $region52
        $region51: #{tpu_custom_call.1} parent=43 // pred_region
          %300 = dma.done [#allocation7], 128
        $region52: #{tpu_custom_call.1} parent=43 // pred_fallthru
          _
        // Predicated region
        $region53: #{tpu_custom_call.1} parent=43 // pred_check
          %p301 = pneg %p107
        $region54: #{tpu_custom_call.1} parent=43 // pred_check_branch
          %303 = sbr.rel (%p301) target = $region56
        $region55: #{tpu_custom_call.1} parent=43 // pred_region
          %304 = dma.done [#allocation7], 256
        $region56: #{tpu_custom_call.1} parent=43 // pred_fallthru
          _
        // Predicated region
        $region57: #{tpu_custom_call.1} parent=43 // pred_check
          %p305 = pneg %p128
        $region58: #{tpu_custom_call.1} parent=43 // pred_check_branch
          %307 = sbr.rel (%p305) target = $region60
        $region59: #{tpu_custom_call.1} parent=43 // pred_region
          %308 = dma.done [#allocation10], 512
        $region60: #{tpu_custom_call.1} parent=43 // pred_fallthru
          _
        %s309 = sand.u32 %s47, 1
        %s310 = scalar_lea.sflag [#allocation4], %s309
        %s311 = sand.u32 %s47, 1
        %s312 = smul.addr %s311, 8
        %s313 = scalar_lea.vmem [#allocation3], %s312
        %p314 = pneg %p60
        %p315 = pneg %p57
        %p316 = pneg %p86
        %p317 = pneg %p83
        %p318 = pneg %p107
        %p319 = pneg %p104
        %p320 = pneg %p128
        %p321 = pneg %p125
        %p322 = pneg %p149
        %p323 = pneg %p146
        %p324 = pneg %p170
        %p325 = pneg %p167
        %p326 = pneg %p198
        %p327 = pneg %p195
        %s328 = sand.u32 %s185, 1
        %s329 = scalar_lea.sflag [#allocation5], %s328
        %s330 = sand.u32 %s185, 1
        %s331 = smul.addr %s330, 8
        %s332 = scalar_lea.vmem [#allocation11], %s331
        %p333 = scmp.eq.s32.totalorder %s30, 0
        // Predicated region
        $region61: #{tpu_custom_call.1} parent=43 // pred_check
          %p334 = pneg %p333
        $region62: #{tpu_custom_call.1} parent=43 // pred_check_branch
          %336 = sbr.rel (%p334) target = $region64
        $region63: #{tpu_custom_call.1} parent=43 // pred_region
          %v337 = vld [vmem:[#allocation6] sm:$0xff]
          %vm338 = vcmask 261120
          %339 = vst.msk [vmem:[#allocation2] sm:$0xff] %vm338, %v337
        $region64: #{tpu_custom_call.1} parent=43 // pred_fallthru
          _
        %v340 = vld [vmem:[#allocation2] sm:$0xff]
        %v341 = vld [vmem:[%s292] sm:$0xff]
        %v342 = vld [vmem:[#allocation8] sm:$0xff]
        %v343 = vld [vmem:[#allocation8 + $0x8] sm:$0xff]
        %v344 = vld [vmem:[#allocation9] sm:$0xff]
        %v345 = vld [vmem:[#allocation9 + $0x8] sm:$0xff]
        %v346 = vld [vmem:[#allocation9 + $0x10] sm:$0xff]
        %v347 = vld [vmem:[#allocation9 + $0x18] sm:$0xff]
        %vm348 = vcmask 261120
        %v350 = vsel %vm348, %v340, 0
        %352 = vmatprep.subr.mxu0 0.0
        %353 = vmatpush1.msra.mxu0 %v344
        %354 = vmatprep.subr.mxu0 0.0
        %355 = vmatpush1.msra.mxu0 %v345
        %356 = vmatprep.subr.mxu0 0.0
        %357 = vmatpush1.msra.mxu0 %v346
        %358 = vmatprep.subr.mxu0 0.0
        %359 = vmatpush1.msra.mxu0 %v347
        %360 = vmatprep.subr.mxu0 0.0
        %361 = vmatpush1.msra.mxu0 0.0
        %362 = vmatprep.subr.mxu0 0.0
        %363 = vmatpush1.msra.mxu0 0.0
        %364 = vmatprep.subr.mxu0 0.0
        %365 = vmatpush1.msra.mxu0 0.0
        %366 = vmatprep.subr.mxu0 0.0
        %367 = vmatpush1.msra.mxu0 0.0
        %368 = vmatprep.subr.mxu0 0.0
        %369 = vmatpush1.msra.mxu0 0.0
        %370 = vmatprep.subr.mxu0 0.0
        %371 = vmatpush1.msra.mxu0 0.0
        %372 = vmatprep.subr.mxu0 0.0
        %373 = vmatpush1.msra.mxu0 0.0
        %374 = vmatprep.subr.mxu0 0.0
        %375 = vmatpush1.msra.mxu0 0.0
        %376 = vmatprep.subr.mxu0 0.0
        %377 = vmatpush1.msra.mxu0 0.0
        %378 = vmatprep.subr.mxu0 0.0
        %379 = vmatpush1.msra.mxu0 0.0
        %380 = vmatprep.subr.mxu0 0.0
        %381 = vmatpush1.msra.mxu0 0.0
        %382 = vmatprep.subr.mxu0 0.0
        %383 = vmatpush1.msra.mxu0 0.0
        %384 = vmatprep.subr.mxu0 0.0
        %385 = vmatpush1.msra.mxu0 0.0
        %386 = vmatprep.subr.mxu0 0.0
        %387 = vmatpush1.msra.mxu0 0.0
        %388 = vmatprep.subr.mxu0 0.0
        %389 = vmatpush1.msra.mxu0 0.0
        %390 = vmatprep.subr.mxu0 0.0
        %391 = vmatpush1.msra.mxu0 0.0
        %392 = vmatprep.subr.mxu0 0.0
        %393 = vmatpush1.msra.mxu0 0.0
        %394 = vmatprep.subr.mxu0 0.0
        %395 = vmatpush1.msra.mxu0 0.0
        %396 = vmatprep.subr.mxu0 0.0
        %397 = vmatpush1.msra.mxu0 0.0
        %398 = vmatprep.subr.mxu0 0.0
        %399 = vmatpush1.msra.mxu0 0.0
        %400 = vmatprep.subr.mxu0 0.0
        %401 = vmatpush1.msra.mxu0 0.0
        %402 = vmatprep.subr.mxu0 0.0
        %403 = vmatpush1.msra.mxu0 0.0
        %404 = vmatprep.subr.mxu0 0.0
        %405 = vmatpush1.msra.mxu0 0.0
        %406 = vmatprep.subr.mxu0 0.0
        %407 = vmatpush1.msra.mxu0 0.0
        %408 = vmatprep.subr.mxu0 0.0
        %409 = vmatpush1.msra.mxu0 0.0
        %410 = vmatprep.subr.mxu0 0.0
        %411 = vmatpush1.msra.mxu0 0.0
        %412 = vmatprep.subr.mxu0 0.0
        %413 = vmatpush1.msra.mxu0 0.0
        %414 = vmatprep.subr.mxu0 0.0
        %415 = vmatpush1.msra.mxu0 0.0
        %416 = vmatprep.mubr.f32.mxu0 0.0
        %417 = vmatmul.mubr.f32.gmra.mrb[0].mxu0 %v350
        %v418 = vpop.f32.mrb[0].mxu0
        %v419 = vadd.f32 0.0, %v418
        %v420 = vpop.f32.mrb[0].mxu0
        %421 = vdwg.mxu0
        %vm422 = vcmask 130048
        %v424 = vsel %vm422, %v341, 0
        %426 = vmatprep.subr.mxu0 0.0
        %427 = vmatpush1.msra.mxu0 %v342
        %428 = vmatprep.subr.mxu0 0.0
        %429 = vmatpush1.msra.mxu0 %v343
        %430 = vmatprep.subr.mxu0 0.0
        %431 = vmatpush1.msra.mxu0 0.0
        %432 = vmatprep.subr.mxu0 0.0
        %433 = vmatpush1.msra.mxu0 0.0
        %434 = vmatprep.subr.mxu0 0.0
        %435 = vmatpush1.msra.mxu0 0.0
        %436 = vmatprep.subr.mxu0 0.0
        %437 = vmatpush1.msra.mxu0 0.0
        %438 = vmatprep.subr.mxu0 0.0
        %439 = vmatpush1.msra.mxu0 0.0
        %440 = vmatprep.subr.mxu0 0.0
        %441 = vmatpush1.msra.mxu0 0.0
        %442 = vmatprep.subr.mxu0 0.0
        %443 = vmatpush1.msra.mxu0 0.0
        %444 = vmatprep.subr.mxu0 0.0
        %445 = vmatpush1.msra.mxu0 0.0
        %446 = vmatprep.subr.mxu0 0.0
        %447 = vmatpush1.msra.mxu0 0.0
        %448 = vmatprep.subr.mxu0 0.0
        %449 = vmatpush1.msra.mxu0 0.0
        %450 = vmatprep.subr.mxu0 0.0
        %451 = vmatpush1.msra.mxu0 0.0
        %452 = vmatprep.subr.mxu0 0.0
        %453 = vmatpush1.msra.mxu0 0.0
        %454 = vmatprep.subr.mxu0 0.0
        %455 = vmatpush1.msra.mxu0 0.0
        %456 = vmatprep.subr.mxu0 0.0
        %457 = vmatpush1.msra.mxu0 0.0
        %458 = vmatprep.subr.mxu0 0.0
        %459 = vmatpush1.msra.mxu0 0.0
        %460 = vmatprep.subr.mxu0 0.0
        %461 = vmatpush1.msra.mxu0 0.0
        %462 = vmatprep.subr.mxu0 0.0
        %463 = vmatpush1.msra.mxu0 0.0
        %464 = vmatprep.subr.mxu0 0.0
        %465 = vmatpush1.msra.mxu0 0.0
        %466 = vmatprep.subr.mxu0 0.0
        %467 = vmatpush1.msra.mxu0 0.0
        %468 = vmatprep.subr.mxu0 0.0
        %469 = vmatpush1.msra.mxu0 0.0
        %470 = vmatprep.subr.mxu0 0.0
        %471 = vmatpush1.msra.mxu0 0.0
        %472 = vmatprep.subr.mxu0 0.0
        %473 = vmatpush1.msra.mxu0 0.0
        %474 = vmatprep.subr.mxu0 0.0
        %475 = vmatpush1.msra.mxu0 0.0
        %476 = vmatprep.subr.mxu0 0.0
        %477 = vmatpush1.msra.mxu0 0.0
        %478 = vmatprep.subr.mxu0 0.0
        %479 = vmatpush1.msra.mxu0 0.0
        %480 = vmatprep.subr.mxu0 0.0
        %481 = vmatpush1.msra.mxu0 0.0
        %482 = vmatprep.subr.mxu0 0.0
        %483 = vmatpush1.msra.mxu0 0.0
        %484 = vmatprep.subr.mxu0 0.0
        %485 = vmatpush1.msra.mxu0 0.0
        %486 = vmatprep.subr.mxu0 0.0
        %487 = vmatpush1.msra.mxu0 0.0
        %488 = vmatprep.subr.mxu0 0.0
        %489 = vmatpush1.msra.mxu0 0.0
        %490 = vmatprep.mubr.f32.mxu0 0.0
        %491 = vmatmul.mubr.f32.gmra.mrb[0].mxu0 %v424
        %v492 = vpop.f32.mrb[0].mxu0
        %v493 = vadd.f32 %v419, %v492
        %v494 = vpop.f32.mrb[0].mxu0
        %495 = vdwg.mxu0
        %vm496 = vcmask 785408
        %v497 = vsel %vm496, %v493, 0.0
        %498 = vadd.xlane.f32.xlu0 %v497
        %v499 = vpop.xlane.xlu0 %498
        %v500 = vrcp.pop 96.0
        %v501 = vmul.f32 %v499, %v500
        %v502 = vsub.f32 %v493, %v501
        %v503 = vmul.f32 %v502, %v502
        %v504 = vsel %vm496, %v503, 0.0
        %505 = vadd.xlane.f32.xlu0 %v504
        %v506 = vpop.xlane.xlu0 %505
        %v507 = vmul.f32 %v506, %v500
        %v508 = vadd.f32 %v507, 1e-05
        %v509 = vrsqrt.pop %v508
        %v510 = vmul.f32 %v502, %v509
        %v511 = vld [vmem:[%s4] sm:$0x1]
        %v513 = vlaneseq
        %v514 = vshrl.u32 %v513, 7
        %v515 = vsub.s32 0, %v514
        %v516 = vrot.slane %v511, %v515
        %v518 = vmul.f32 %v510, %v516
        %v519 = vld [vmem:[%s5] sm:$0x1]
        %v521 = vlaneseq
        %v522 = vshrl.u32 %v521, 7
        %v523 = vsub.s32 0, %v522
        %v524 = vrot.slane %v519, %v523
        %v526 = vadd.f32 %v518, %v524
        %v527 = vxor.u32 %v526, 2147483648
        %v528 = vmul.f32 %v527, 1.442695
        %v529 = vpow.pop %v528
        %v530 = vadd.f32 %v529, 1.0
        %v531 = vrcp.pop %v530
        %v532 = vmul.f32 1.0, %v531
        %534 = vrot.lane.b32.xlu0 %v526, 96
        %v535 = vpop.permute.xlu0 %534
        %v537 = vmul.f32 %v532, %v535
        %v538 = vtanh.pop %v537
        %v539 = vsub.f32 %v538, %v340
        %541 = vrot.lane.b32.xlu0 %v539, 64
        %v542 = vpop.permute.xlu0 %541
        %v544 = vmul.f32 %v532, %v542
        %546 = vrot.lane.b32.xlu0 %v544, 64
        %v547 = vpop.permute.xlu0 %546
        %v549 = vadd.f32 %v340, %v547
        %550 = vst.msk [vmem:[#allocation2] sm:$0xff] %vm348, %v549
        %551 = vst.msk [vmem:[%s332] sm:$0xff] %vm348, %v549
        %s552 = sand.u32 %s185, 1
        %s553 = scalar_lea.sflag [#allocation5], %s552
        %s554 = sand.u32 %s185, 1
        %s555 = smul.addr %s554, 8
        %s556 = scalar_lea.vmem [#allocation11], %s555
        // Predicated region
        $region65: #{tpu_custom_call.1} parent=43 // pred_check
          %p557 = pneg %p195
        $region66: #{tpu_custom_call.1} parent=43 // pred_check_branch
          %559 = sbr.rel (%p557) target = $region68
        $region67: #{tpu_custom_call.1} parent=43 // pred_region
          %s561 = ssub.s32 128, 128
          %562 = vsyncadd %s553, %s561
          %s563 = sadd.s32 %s29, %s30
          %s564 = smul.addr %s563, 128
          %s565 = scalar_lea.hbm %s6, %s564
          %s567 = sshll.u32 %s556, 4
          %s568 = int_to_ptr.vmem [resolvable:$true] %s567
          %570 = dma.vmem_to_hbm [thread:$0]  %s568, 128, %s565, %s553
        $region68: #{tpu_custom_call.1} parent=43 // pred_fallthru
          _
      $region44: #{tpu_custom_call.1} parent=5 // pred_fallthru
        _
      %p571 = scmp.le.s32.totalorder 2, %s20
      // Predicated region
      $region69: #{tpu_custom_call.1} parent=5 // pred_check
        %p572 = pneg %p571
      $region70: #{tpu_custom_call.1} parent=5 // pred_check_branch
        %574 = sbr.rel (%p572) target = $region72
      $region71: #{tpu_custom_call.1} parent=5 // pred_region
        %s575 = ssub.s32 %s20, 2
        // Predicated region
        $region73: #{tpu_custom_call.1} parent=71 // pred_check
          %p576 = pneg %p201
        $region74: #{tpu_custom_call.1} parent=71 // pred_check_branch
          %578 = sbr.rel (%p576) target = $region76
        $region75: #{tpu_custom_call.1} parent=71 // pred_region
          %s579 = sand.u32 %s186, 1
          %s580 = scalar_lea.sflag [#allocation5], %s579
          %s581 = sand.u32 %s186, 1
          %s582 = smul.addr %s581, 8
          %s583 = scalar_lea.vmem [#allocation11], %s582
          %584 = dma.done %s580, 128
        $region76: #{tpu_custom_call.1} parent=71 // pred_fallthru
          _
      $region72: #{tpu_custom_call.1} parent=5 // pred_fallthru
        _
    $region6: #{tpu_custom_call.1} parent=1 // loop_footer
      %s24 = sadd.s32 1, %s20
    $region7: #{tpu_custom_call.1} parent=1 // loop_footer_branch
      %19 = sbr.rel target = $region3
    $region8: #{tpu_custom_call.1} parent=1 // loop_exit
      _
    %585 = vsyncpa [#allocation4], 1
    %s586 = scalar_lea.sflag [#allocation4], 1
    %587 = vsyncpa %s586, 1
    %588 = vsyncpa [#allocation7], 1
    %589 = vsyncpa [#allocation10], 1
    %590 = vsyncpa [#allocation5], 1
    %s591 = scalar_lea.sflag [#allocation5], 1
    %592 = vsyncpa %s591, 1

</llo_original>
